<compile_context>
chip_gen: v7x
topology: tpu7x:2x2x1
jax: 0.10.0
libtpu: 0.0.40
codegen_flags: <defaults>
</compile_context>

<pallas_src>
import functools

import jax
import jax.numpy as jnp
from jax.experimental import pallas as pl
from jax.experimental.pallas import tpu as pltpu


# -----------------------------------------------------------------------------
# Fused kernel.
# Grid: (N, S_pad // tS) -- N "parallel" (megacore), S "arbitrary" (reduction).
# CORRECTNESS NOTE: the (Cf, 1) scratch accumulator carries across the spatial
# axis only; the spatial axis MUST stay innermost and marked "arbitrary".
# -----------------------------------------------------------------------------
def _fused_kernel(x_ref, wbb_ref, bbb_ref, wred_ref, bred_ref, o_ref, acc_ref,
                  *, inv_s, s_valid, tile_s):
    # x_ref:    (1, Cin, tS)  one image, channels x spatial tile, NATIVE dtype
    # wbb_ref:  (Cf, Cin)     backbone pointwise conv, preprocess folded in (f32)
    # bbb_ref:  (Cf, 1)       folded backbone bias
    # wred_ref: (Cf, Fc)      reduction 1x1 conv, BatchNorm folded in
    # bred_ref: (1, Fc)       folded reduction bias
    # o_ref:    (1, 1, Fc)    embedding row for this image (written at last tile)
    # acc_ref:  (Cf, 1)       f32 running spatial sum of ReLU features
    s = pl.program_id(1)

    @pl.when(s == 0)
    def _():
        acc_ref[...] = jnp.zeros_like(acc_ref)

    # Cast AFTER the DMA: HBM traffic is the native (uint8) byte count.
    x = x_ref[0].astype(jnp.float32)                              # (Cin, tS)

    # Backbone pointwise conv (preprocess pre-folded) + ReLU.  K = Cin is tiny
    # (MXU-starved) but the work is negligible and keeps the VALU slot free.
    # TODO(synk): for real backbone channel counts, cast x / wbb to bf16 here
    # (f32 accumulate) to halve DMA bytes and hit native MXU rate.
    feat = jnp.dot(wbb_ref[...], x, preferred_element_type=jnp.float32)
    feat = jnp.maximum(feat + bbb_ref[...], 0.0)                  # (Cf, tS)

    if s_valid is not None:
        # Spatial axis was zero-padded to a multiple of 128.  Pad pixels give
        # ReLU(bias) != 0, so mask them before pooling (static branch).
        col = jax.lax.broadcasted_iota(jnp.int32, feat.shape, 1) + s * tile_s
        feat = jnp.where(col < s_valid, feat, 0.0)

    # Per-tile lane reduction (XLU slot, effectively free) into a tiny
    # accumulator -> scratch VMEM independent of tS, no full-width RMW.
    acc_ref[...] += jnp.sum(feat, axis=1, keepdims=True)

    @pl.when(s == pl.num_programs(1) - 1)
    def _():
        # postprocess 'avg'
        pooled = acc_ref[...] * inv_s                             # (Cf, 1)
        # reduction conv + folded BN: tiny head -> broadcast-mul + sublane
        # reduce (avoids any transpose of the pooled column).
        y = jnp.sum(pooled * wred_ref[...], axis=0, keepdims=True) + bred_ref[...]
        # ModuleHelper.normalize(method='l2').  NOTE: eps differs slightly from
        # torch's  y / max(||y||, 1e-12)  -- identical except for exactly-zero
        # embeddings; rsqrt lands on the EUP slot.
        ssq = jnp.sum(y * y, axis=-1, keepdims=True)
        y = y * jax.lax.rsqrt(jnp.maximum(ssq, 1e-24))
        # Fc < 128 -> masked vst; trivial bytes here.  If Fc grows, pad/pack
        # the output toward a multiple of 128 for a lane-dense store.
        o_ref[...] = y[None]                                      # (1, 1, Fc)


def _pick_s_tile(s_pad, c_in, c_feat, in_itemsize, *,
                 vmem_budget_bytes=12 << 20, hard_cap=8192):
    """Largest multiple-of-128 spatial tile dividing s_pad, bounded by a
    VMEM budget derived from what actually scales with the tile:
      - the (Cf, tS) f32 feature tile (counted twice for compiler temps)
      - the double-buffered native-dtype input block (2 * Cin * tS bytes)
    plus a hard cap and a ">= 2 grid steps" rule so the input DMA pipelines.
    Grid-step overhead (~0.35 us/step) dominates at small tiles, so bigger
    is better until the VMEM budget bites (only at real backbone Cf)."""
    bytes_per_lane = 2 * c_feat * 4 + 2 * c_in * in_itemsize
    cap = max(128, (vmem_budget_bytes // bytes_per_lane) // 128 * 128)
    cap = min(cap, hard_cap)
    if s_pad >= 2 * 128:
        cap = min(cap, s_pad // 2)        # keep >= 2 steps for pipelining
    best = 128
    t = 128
    while t <= cap:
        if s_pad % t == 0:
            best = t
        t += 128
    return best


def deploy_cls_forward(x_nchw, params, *, vmem_budget_bytes=12 << 20):
    """Default DeployClsModel forward path. Returns a (N * fc_dim,) vector."""
    N, Cin, H, W = x_nchw.shape
    S = H * W
    Cf = params["w_bb"].shape[1]
    Fc = params["w_red"].shape[1]

    # ---- fold preprocess ((x/255 - mean)/std) into the backbone conv ----
    mean = params["mean"].astype(jnp.float32)
    std = params["std"].astype(jnp.float32)
    inv = 1.0 / (255.0 * std)                                              # (1, Cin)
    w1 = params["w_bb"] * inv.reshape(Cin, 1)                              # (Cin, Cf)
    b1 = params["b_bb"] - (mean / std) @ params["w_bb"]                    # (1, Cf)
    wbb_k = jnp.asarray(w1.T)                                              # (Cf, Cin)
    bbb_k = jnp.asarray(b1.T)                                              # (Cf, 1)

    # ---- fold BatchNorm2d (eval mode) into the reduction 1x1 conv ----
    bn_scale = params["bn_gamma"] * jax.lax.rsqrt(params["bn_rvar"] + 1e-5)  # (1, Fc)
    wred_k = params["w_red"] * bn_scale                                    # (Cf, Fc)
    bred_k = (params["b_red"] - params["bn_rmean"]) * bn_scale + params["bn_beta"]

    # NCHW -> (N, Cin, H*W): free reshape, spatial on the 128-lane axis.
    # NO dtype cast here: the kernel DMAs the native (e.g. uint8) bytes.
    x = x_nchw.reshape(N, Cin, S)

    # Pad odd spatial extents up to a multiple of 128 (masked in-kernel) so the
    # lane-dense tiling survives instead of collapsing into one giant block.
    S_pad = ((S + 127) // 128) * 128
    s_valid = None
    if S_pad != S:
        x = jnp.pad(x, ((0, 0), (0, 0), (0, S_pad - S)))
        s_valid = S

    tS = _pick_s_tile(S_pad, Cin, Cf, jnp.dtype(x.dtype).itemsize,
                      vmem_budget_bytes=vmem_budget_bytes)
    assert S_pad % tS == 0

    kernel = functools.partial(_fused_kernel, inv_s=1.0 / S,
                               s_valid=s_valid, tile_s=tS)

    out = pl.pallas_call(
        kernel,
        out_shape=jax.ShapeDtypeStruct((N, 1, Fc), jnp.float32),
        grid=(N, S_pad // tS),
        in_specs=[
            pl.BlockSpec((1, Cin, tS), lambda n, s: (n, 0, s)),
            pl.BlockSpec((Cf, Cin), lambda n, s: (0, 0)),
            pl.BlockSpec((Cf, 1), lambda n, s: (0, 0)),
            pl.BlockSpec((Cf, Fc), lambda n, s: (0, 0)),
            pl.BlockSpec((1, Fc), lambda n, s: (0, 0)),
        ],
        out_specs=pl.BlockSpec((1, 1, Fc), lambda n, s: (n, 0, 0)),
        scratch_shapes=[pltpu.VMEM((Cf, 1), jnp.float32)],
        compiler_params=pltpu.CompilerParams(
            # Spatial axis must stay innermost + "arbitrary" (scratch carries
            # across it); batch axis is "parallel" for megacore / v7x 2-TC.
            dimension_semantics=("parallel", "arbitrary"),
            vmem_limit_bytes=32 * 1024 * 1024),
    )(x, wbb_k, bbb_k, wred_k, bred_k)

    # x.flatten(1) is already (N, Fc); final `out.flatten()`:
    return out.reshape(-1)


def deploy_cls_forward_ref(x_nchw, params):
    """Pure-JAX reference (un-folded math) for correctness checking."""
    N, Cin, H, W = x_nchw.shape
    x = jnp.transpose(x_nchw, (0, 2, 3, 1)).reshape(N, H * W, Cin).astype(jnp.float32)
    xn = (x / 255.0 - params["mean"]) / params["std"]
    feat = jnp.maximum(jnp.einsum("nsc,cf->nsf", xn, params["w_bb"]) + params["b_bb"], 0.0)
    pooled = jnp.mean(feat, axis=1)                                        # (N, Cf)
    y = pooled @ params["w_red"] + params["b_red"]
    y = params["bn_gamma"] * (y - params["bn_rmean"]) * jax.lax.rsqrt(
        params["bn_rvar"] + 1e-5) + params["bn_beta"]
    y = y / jnp.maximum(jnp.sqrt(jnp.sum(y * y, axis=-1, keepdims=True)), 1e-12)
    return y.reshape(-1)


if __name__ == "__main__":
    # Small, deterministic shapes: batch=2, 3-channel images,
    # backbone num_features=32, fc_dim_out (reduction)=16.
    N, Cin, Cf, Fc = 2, 3, 32, 16

    key = jax.random.PRNGKey(0)
    k_x1, k_x2, k_w1, k_b1, k_w2, k_g, k_b, k_rm, k_rv = jax.random.split(key, 9)

    params = {
        # data.normalize (ImageNet-style, per input channel)
        "mean": jnp.array([[0.485, 0.456, 0.406]], jnp.float32),           # (1, Cin)
        "std": jnp.array([[0.229, 0.224, 0.225]], jnp.float32),            # (1, Cin)
        # synthetic backbone pointwise conv
        "w_bb": jax.random.normal(k_w1, (Cin, Cf), jnp.float32) * 0.2,
        "b_bb": jax.random.normal(k_b1, (1, Cf), jnp.float32) * 0.05,
        # reduction: nn.Conv2d(num_features, fc_dim_out, 1)
        "w_red": jax.random.normal(k_w2, (Cf, Fc), jnp.float32) * 0.2,
        "b_red": jnp.zeros((1, Fc), jnp.float32),
        # BatchNorm2d(fc_dim) running stats / affine (eval mode)
        "bn_gamma": 1.0 + 0.1 * jax.random.normal(k_g, (1, Fc), jnp.float32),
        "bn_beta": 0.1 * jax.random.normal(k_b, (1, Fc), jnp.float32),
        "bn_rmean": 0.1 * jax.random.normal(k_rm, (1, Fc), jnp.float32),
        "bn_rvar": jnp.abs(jax.random.normal(k_rv, (1, Fc), jnp.float32)) + 0.5,
    }

    # Case 1: uint8 image, 32x32 (S=1024 -> 2 spatial accumulation steps/image).
    x1 = jax.random.randint(k_x1, (N, Cin, 32, 32), 0, 256, jnp.int32).astype(jnp.uint8)
    out1 = jax.block_until_ready(deploy_cls_forward(x1, params))
    ref1 = deploy_cls_forward_ref(x1, params)
    assert out1.shape == (N * Fc,), out1.shape
    assert jnp.allclose(out1, ref1, atol=2e-4, rtol=2e-4), "case1 mismatch vs reference"

    # Case 2: non-128-aligned spatial extent, 30x30 (S=900 -> padded to 1024,
    # pad columns masked inside the kernel).
    x2 = jax.random.randint(k_x2, (N, Cin, 30, 30), 0, 256, jnp.int32).astype(jnp.uint8)
    out2 = jax.block_until_ready(deploy_cls_forward(x2, params))
    ref2 = deploy_cls_forward_ref(x2, params)
    assert out2.shape == (N * Fc,), out2.shape
    assert jnp.allclose(out2, ref2, atol=2e-4, rtol=2e-4), "case2 mismatch vs reference"

    print("KERNEL_OK")
</pallas_src>

<mosaic_0001>
module attributes {stable_mosaic.version = 11 : i64} {
  func.func @_fused_kernel(%arg0: i32, %arg1: i32, %arg2: memref<1x3x512xi8, #tpu.memory_space<vmem>>, %arg3: memref<32x3xf32, #tpu.memory_space<vmem>>, %arg4: memref<32x1xf32, #tpu.memory_space<vmem>>, %arg5: memref<32x16xf32, #tpu.memory_space<vmem>>, %arg6: memref<1x16xf32, #tpu.memory_space<vmem>>, %arg7: memref<1x1x16xf32, #tpu.memory_space<vmem>>, %arg8: memref<32x1xf32, #tpu.memory_space<vmem>>) attributes {dimension_semantics = [#tpu.dimension_semantics<parallel>, #tpu.dimension_semantics<arbitrary>], iteration_bounds = array<i64: 2, 2>, scalar_prefetch = 0 : i64, scratch_operands = 1 : i64, tpu.core_type = #tpu.core_type<tc>, window_params = [{transform_indices = @transform_0, window_bounds = array<i64: 1, 3, 512>}, {pipeline_mode = #tpu.pipeline_mode<synchronous>, transform_indices = @transform_1, window_bounds = array<i64: 32, 3>}, {pipeline_mode = #tpu.pipeline_mode<synchronous>, transform_indices = @transform_2, window_bounds = array<i64: 32, 1>}, {pipeline_mode = #tpu.pipeline_mode<synchronous>, transform_indices = @transform_3, window_bounds = array<i64: 32, 16>}, {pipeline_mode = #tpu.pipeline_mode<synchronous>, transform_indices = @transform_4, window_bounds = array<i64: 1, 16>}, {transform_indices = @transform_5, window_bounds = array<i64: 1, 1, 16>}]} {
    %c0_i32 = arith.constant 0 : i32
    %0 = arith.cmpi eq, %arg1, %c0_i32 : i32
    %1 = arith.extui %0 : i1 to i32
    %c0_i32_0 = arith.constant 0 : i32
    %2 = arith.cmpi ne, %1, %c0_i32_0 : i32
    scf.if %2 {
      %cst_14 = arith.constant 0.000000e+00 : f32
      %21 = vector.broadcast %cst_14 : f32 to vector<32x1xf32>
      %c0_15 = arith.constant 0 : index
      %c0_16 = arith.constant 0 : index
      %22 = vector.load %arg8[%c0_15, %c0_16] : memref<32x1xf32, #tpu.memory_space<vmem>>, vector<32x1xf32>
      tpu.vector_store %arg8[%c0_15, %c0_16], %21 {strides = array<i32>} : memref<32x1xf32, #tpu.memory_space<vmem>>, vector<32x1xf32>,
    } else {
    }
    %c0 = arith.constant 0 : index
    %c0_1 = arith.constant 0 : index
    %c0_2 = arith.constant 0 : index
    %3 = vector.load %arg2[%c0, %c0_1, %c0_2] : memref<1x3x512xi8, #tpu.memory_space<vmem>>, vector<1x3x512xi8>
    %4 = vector.shape_cast %3 : vector<1x3x512xi8> to vector<3x512xi8>
    %5 = arith.uitofp %4 : vector<3x512xi8> to vector<3x512xf32>
    %c0_3 = arith.constant 0 : index
    %c0_4 = arith.constant 0 : index
    %6 = vector.load %arg3[%c0_3, %c0_4] : memref<32x3xf32, #tpu.memory_space<vmem>>, vector<32x3xf32>
    %cst = arith.constant dense<0.000000e+00> : vector<32x512xf32>
    %7 = tpu.matmul %6, %5, %cst {dimension_numbers = #tpu.dot_dimension_numbers<[1], [0], [0], [1], [0, 0, 1, 1], [], []>} : vector<32x3xf32>, vector<3x512xf32>, vector<32x512xf32> -> vector<32x512xf32>
    %c0_5 = arith.constant 0 : index
    %c0_6 = arith.constant 0 : index
    %8 = vector.load %arg4[%c0_5, %c0_6] : memref<32x1xf32, #tpu.memory_space<vmem>>, vector<32x1xf32>
    %9 = vector.broadcast %8 : vector<32x1xf32> to vector<32x512xf32>
    %10 = arith.addf %7, %9 : vector<32x512xf32>
    %cst_7 = arith.constant 0.000000e+00 : f32
    %11 = vector.broadcast %cst_7 : f32 to vector<32x512xf32>
    %12 = arith.maximumf %10, %11 : vector<32x512xf32>
    %c0_8 = arith.constant 0 : index
    %c0_9 = arith.constant 0 : index
    %13 = vector.load %arg8[%c0_8, %c0_9] : memref<32x1xf32, #tpu.memory_space<vmem>>, vector<32x1xf32>
    %cst_10 = arith.constant dense<0.000000e+00> : vector<32xf32>
    %14 = vector.multi_reduction <add>, %12, %cst_10 [1] : vector<32x512xf32> to vector<32xf32>
    %15 = vector.shape_cast %14 : vector<32xf32> to vector<32x1xf32>
    %16 = arith.addf %13, %15 : vector<32x1xf32>
    %c0_11 = arith.constant 0 : index
    %c0_12 = arith.constant 0 : index
    %17 = vector.load %arg8[%c0_11, %c0_12] : memref<32x1xf32, #tpu.memory_space<vmem>>, vector<32x1xf32>
    tpu.vector_store %arg8[%c0_11, %c0_12], %16 {strides = array<i32>} : memref<32x1xf32, #tpu.memory_space<vmem>>, vector<32x1xf32>,
    %c1_i32 = arith.constant 1 : i32
    %18 = arith.cmpi eq, %arg1, %c1_i32 : i32
    %19 = arith.extui %18 : i1 to i32
    %c0_i32_13 = arith.constant 0 : i32
    %20 = arith.cmpi ne, %19, %c0_i32_13 : i32
    scf.if %20 {
      %c0_14 = arith.constant 0 : index
      %c0_15 = arith.constant 0 : index
      %21 = vector.load %arg8[%c0_14, %c0_15] : memref<32x1xf32, #tpu.memory_space<vmem>>, vector<32x1xf32>
      %cst_16 = arith.constant 9.765625E-4 : f32
      %22 = vector.broadcast %cst_16 : f32 to vector<32x1xf32>
      %23 = arith.mulf %21, %22 : vector<32x1xf32>
      %c0_17 = arith.constant 0 : index
      %c0_18 = arith.constant 0 : index
      %24 = vector.load %arg5[%c0_17, %c0_18] : memref<32x16xf32, #tpu.memory_space<vmem>>, vector<32x16xf32>
      %25 = vector.broadcast %23 : vector<32x1xf32> to vector<32x16xf32>
      %26 = arith.mulf %25, %24 : vector<32x16xf32>
      %cst_19 = arith.constant dense<0.000000e+00> : vector<16xf32>
      %27 = vector.multi_reduction <add>, %26, %cst_19 [0] : vector<32x16xf32> to vector<16xf32>
      %28 = vector.shape_cast %27 : vector<16xf32> to vector<1x16xf32>
      %c0_20 = arith.constant 0 : index
      %c0_21 = arith.constant 0 : index
      %29 = vector.load %arg6[%c0_20, %c0_21] : memref<1x16xf32, #tpu.memory_space<vmem>>, vector<1x16xf32>
      %30 = arith.addf %28, %29 : vector<1x16xf32>
      %31 = arith.mulf %30, %30 : vector<1x16xf32>
      %cst_22 = arith.constant dense<0.000000e+00> : vector<1xf32>
      %32 = vector.multi_reduction <add>, %31, %cst_22 [1] : vector<1x16xf32> to vector<1xf32>
      %33 = vector.shape_cast %32 : vector<1xf32> to vector<1x1xf32>
      %cst_23 = arith.constant 1.000000e-24 : f32
      %34 = vector.broadcast %cst_23 : f32 to vector<1x1xf32>
      %35 = arith.maximumf %33, %34 : vector<1x1xf32>
      %36 = math.rsqrt %35 : vector<1x1xf32>
      %37 = vector.broadcast %36 : vector<1x1xf32> to vector<1x16xf32>
      %38 = arith.mulf %30, %37 : vector<1x16xf32>
      %39 = vector.shape_cast %38 : vector<1x16xf32> to vector<1x1x16xf32>
      %c0_24 = arith.constant 0 : index
      %c0_25 = arith.constant 0 : index
      %c0_26 = arith.constant 0 : index
      %40 = vector.load %arg7[%c0_24, %c0_25, %c0_26] : memref<1x1x16xf32, #tpu.memory_space<vmem>>, vector<1x1x16xf32>
      tpu.vector_store %arg7[%c0_24, %c0_25, %c0_26], %39 {strides = array<i32>} : memref<1x1x16xf32, #tpu.memory_space<vmem>>, vector<1x1x16xf32>,
    } else {
    }
    return
  }
  func.func @transform_0(%arg0: i32, %arg1: i32) -> (i32, i32, i32) {
    %c0_i32 = arith.constant 0 : i32
    %c0_i32_0 = arith.constant 0 : i32
    return %arg0, %c0_i32, %arg1 : i32, i32, i32
  }
  func.func @transform_1(%arg0: i32, %arg1: i32) -> (i32, i32) {
    %c0_i32 = arith.constant 0 : i32
    %c0_i32_0 = arith.constant 0 : i32
    %c0_i32_1 = arith.constant 0 : i32
    return %c0_i32, %c0_i32_0 : i32, i32
  }
  func.func @transform_2(%arg0: i32, %arg1: i32) -> (i32, i32) {
    %c0_i32 = arith.constant 0 : i32
    %c0_i32_0 = arith.constant 0 : i32
    %c0_i32_1 = arith.constant 0 : i32
    return %c0_i32, %c0_i32_0 : i32, i32
  }
  func.func @transform_3(%arg0: i32, %arg1: i32) -> (i32, i32) {
    %c0_i32 = arith.constant 0 : i32
    %c0_i32_0 = arith.constant 0 : i32
    %c0_i32_1 = arith.constant 0 : i32
    return %c0_i32, %c0_i32_0 : i32, i32
  }
  func.func @transform_4(%arg0: i32, %arg1: i32) -> (i32, i32) {
    %c0_i32 = arith.constant 0 : i32
    %c0_i32_0 = arith.constant 0 : i32
    %c0_i32_1 = arith.constant 0 : i32
    return %c0_i32, %c0_i32_0 : i32, i32
  }
  func.func @transform_5(%arg0: i32, %arg1: i32) -> (i32, i32, i32) {
    %c0_i32 = arith.constant 0 : i32
    %c0_i32_0 = arith.constant 0 : i32
    %c0_i32_1 = arith.constant 0 : i32
    return %arg0, %c0_i32, %c0_i32_0 : i32, i32, i32
  }
}

</mosaic_0001>

<llo_original>
// kernel: tpu_custom_call.1
$region0: #{tpu_custom_call.1}
  #allocation0 [shape = 'u32[]', space=smem, size = 0x4, offset = 0x4, fixed_abs, tag = 'smem constant byte address 0x4 - core index']
  #allocation1 [shape = 'u32[144,128]{1,0:T(1,128)}', space=vmem, size = 0x12000, scoped, tag = 'internal scratch']
  #allocation2 [shape = 'f32[32,1]{1,0:T(8,128)}', space=vmem, size = 0x4000, scoped, tag = 'scratch operand']
  %s0 = inlined_call_operand.vmem [shape: u8[2,3,1024], index: 0, kind: input, shape index: {}]
  %s1 = inlined_call_operand.vmem [shape: f32[32,3], index: 1, kind: input, shape index: {}]
  %s2 = inlined_call_operand.vmem [shape: f32[32,1], index: 2, kind: input, shape index: {}]
  %s3 = inlined_call_operand.vmem [shape: f32[32,16], index: 3, kind: input, shape index: {}]
  %s4 = inlined_call_operand.vmem [shape: f32[1,16], index: 4, kind: input, shape index: {}]
  %s5 = inlined_call_operand.hbm [shape: f32[2,1,16], index: 5, kind: output, shape index: {}]
  %s6 = sld [smem:[#allocation0]]
  $region61: #{tpu_custom_call.1} parent=0
    _
  %s8 = ssub.s32 1, %s6
  %s9 = scalar_select 0, %s8, %s6
  $region1: #{tpu_custom_call.1} parent=0
    #allocation3 [shape = 'u8[1024]{0}', space=vmem, size = 0x400, scoped, tag = 'output window, operand 0']
    #allocation4 [shape = 's32[2]{0}', space=sflag, size = 0x8, scoped, tag = 'scoped memory for tpu_custom_call.1']
    %10 = vsyncpa [#allocation4], 0
    %s11 = scalar_lea.sflag [#allocation4], 1
    %12 = vsyncpa %s11, 0
    loop: start=0, step=1, limit=6
    $region2: #{tpu_custom_call.1} parent=1 // loop_pre_header
      _
    $region3: #{tpu_custom_call.1} parent=1 // loop_header
      %s14 = sphi 0, %s18
      %p15 = scmp.ge.s32.totalorder %s14, 6
      %s21 = sphi 0, %s33
      %s22 = sphi 0, %s29
      %s23 = sphi 0, %s21
      %s24 = sphi 0, %s22
      %s25 = sphi 0, %s23
      %s26 = sphi 0, %s24
      %s38 = sphi 0, %s40
      %s41 = sphi 0, %s38
      %s42 = sphi 0, %s41
      %s58 = sphi 0, %s42
      %s62 = sphi 0, %s62
      %s64 = sphi 0, %s62
      %s65 = sphi 0, %s64
      %s79 = sphi 0, %s65
      %s83 = sphi 0, %s83
      %s85 = sphi 0, %s83
      %s86 = sphi 0, %s85
      %s100 = sphi 0, %s86
      %s104 = sphi 0, %s104
      %s106 = sphi 0, %s104
      %s107 = sphi 0, %s106
      %s121 = sphi 0, %s107
      %s125 = sphi 0, %s125
      %s127 = sphi 0, %s125
      %s128 = sphi 0, %s127
      %s142 = sphi 0, %s128
      %s148 = sphi 0, %s150
      %s151 = sphi 0, %s148
      %s152 = sphi 0, %s151
      %s168 = sphi 0, %s152
    $region4: #{tpu_custom_call.1} parent=1 // loop_header_branch
      %17 = sbr.rel (%p15) target = $region8
    $region5: #{tpu_custom_call.1} parent=1 // loop_body
      %s19 = ssub.s32 %s14, 1
      %s20 = ssub.s32 %s14, 2
      %s27 = sadd.s32 1, %s22
      %p28 = scmp.ge.s32.totalorder %s27, 2
      %s29 = scalar_select %p28, 0, %s27
      %s30 = sadd.s32 1, %s21
      %s31 = scalar_select %p28, %s30, %s21
      %p32 = scmp.ge.s32.totalorder %s31, 2
      %s33 = scalar_select %p32, 0, %s31
      %s34 = ssub.s32 %s21, %s33
      %s35 = ssub.s32 %s22, %s29
      %s36 = sor.u32 %s34, %s35
      %p37 = scmp.eq.s32.totalorder %s36, 0
      %s39 = sadd.s32 %s38, 1
      %s40 = scalar_select %p37, %s38, %s39
      %p43 = pneg %p37
      %p44 = scmp.eq.s32.totalorder %s14, 3
      %p45 = por %p43, %p44
      %p46 = scmp.ne.s32.totalorder %s38, %s41
      %p47 = scmp.eq.s32.totalorder %s14, 0
      %p48 = por %p46, %p47
      %p49 = scmp.ne.s32.totalorder %s38, %s41
      %p50 = scmp.eq.s32.totalorder %s19, 3
      %p51 = por %p49, %p50
      %p52 = scmp.ne.s32.totalorder %s41, %s42
      %p53 = scmp.eq.s32.totalorder %s19, 0
      %p54 = por %p52, %p53
      %p55 = scmp.ne.s32.totalorder %s41, %s42
      %p56 = scmp.eq.s32.totalorder %s20, 3
      %p57 = por %p55, %p56
      %p59 = scmp.ne.s32.totalorder %s42, %s58
      %p60 = scmp.eq.s32.totalorder %s20, 0
      %p61 = por %p59, %p60
      %s63 = sadd.s32 %s62, 1
      %p66 = scmp.eq.s32.totalorder %s14, 3
      %p67 = scmp.ne.s32.totalorder %s62, %s64
      %p68 = scmp.eq.s32.totalorder %s14, 0
      %p69 = por %p67, %p68
      %p70 = scmp.ne.s32.totalorder %s62, %s64
      %p71 = scmp.eq.s32.totalorder %s19, 3
      %p72 = por %p70, %p71
      %p73 = scmp.ne.s32.totalorder %s64, %s65
      %p74 = scmp.eq.s32.totalorder %s19, 0
      %p75 = por %p73, %p74
      %p76 = scmp.ne.s32.totalorder %s64, %s65
      %p77 = scmp.eq.s32.totalorder %s20, 3
      %p78 = por %p76, %p77
      %p80 = scmp.ne.s32.totalorder %s65, %s79
      %p81 = scmp.eq.s32.totalorder %s20, 0
      %p82 = por %p80, %p81
      %s84 = sadd.s32 %s83, 1
      %p87 = scmp.eq.s32.totalorder %s14, 3
      %p88 = scmp.ne.s32.totalorder %s83, %s85
      %p89 = scmp.eq.s32.totalorder %s14, 0
      %p90 = por %p88, %p89
      %p91 = scmp.ne.s32.totalorder %s83, %s85
      %p92 = scmp.eq.s32.totalorder %s19, 3
      %p93 = por %p91, %p92
      %p94 = scmp.ne.s32.totalorder %s85, %s86
      %p95 = scmp.eq.s32.totalorder %s19, 0
      %p96 = por %p94, %p95
      %p97 = scmp.ne.s32.totalorder %s85, %s86
      %p98 = scmp.eq.s32.totalorder %s20, 3
      %p99 = por %p97, %p98
      %p101 = scmp.ne.s32.totalorder %s86, %s100
      %p102 = scmp.eq.s32.totalorder %s20, 0
      %p103 = por %p101, %p102
      %s105 = sadd.s32 %s104, 1
      %p108 = scmp.eq.s32.totalorder %s14, 3
      %p109 = scmp.ne.s32.totalorder %s104, %s106
      %p110 = scmp.eq.s32.totalorder %s14, 0
      %p111 = por %p109, %p110
      %p112 = scmp.ne.s32.totalorder %s104, %s106
      %p113 = scmp.eq.s32.totalorder %s19, 3
      %p114 = por %p112, %p113
      %p115 = scmp.ne.s32.totalorder %s106, %s107
      %p116 = scmp.eq.s32.totalorder %s19, 0
      %p117 = por %p115, %p116
      %p118 = scmp.ne.s32.totalorder %s106, %s107
      %p119 = scmp.eq.s32.totalorder %s20, 3
      %p120 = por %p118, %p119
      %p122 = scmp.ne.s32.totalorder %s107, %s121
      %p123 = scmp.eq.s32.totalorder %s20, 0
      %p124 = por %p122, %p123
      %s126 = sadd.s32 %s125, 1
      %p129 = scmp.eq.s32.totalorder %s14, 3
      %p130 = scmp.ne.s32.totalorder %s125, %s127
      %p131 = scmp.eq.s32.totalorder %s14, 0
      %p132 = por %p130, %p131
      %p133 = scmp.ne.s32.totalorder %s125, %s127
      %p134 = scmp.eq.s32.totalorder %s19, 3
      %p135 = por %p133, %p134
      %p136 = scmp.ne.s32.totalorder %s127, %s128
      %p137 = scmp.eq.s32.totalorder %s19, 0
      %p138 = por %p136, %p137
      %p139 = scmp.ne.s32.totalorder %s127, %s128
      %p140 = scmp.eq.s32.totalorder %s20, 3
      %p141 = por %p139, %p140
      %p143 = scmp.ne.s32.totalorder %s128, %s142
      %p144 = scmp.eq.s32.totalorder %s20, 0
      %p145 = por %p143, %p144
      %s146 = ssub.s32 %s21, %s33
      %p147 = scmp.eq.s32.totalorder %s146, 0
      %s149 = sadd.s32 %s148, 1
      %s150 = scalar_select %p147, %s148, %s149
      %p153 = pneg %p147
      %p154 = scmp.eq.s32.totalorder %s14, 3
      %p155 = por %p153, %p154
      %p156 = scmp.ne.s32.totalorder %s148, %s151
      %p157 = scmp.eq.s32.totalorder %s14, 0
      %p158 = por %p156, %p157
      %p159 = scmp.ne.s32.totalorder %s148, %s151
      %p160 = scmp.eq.s32.totalorder %s19, 3
      %p161 = por %p159, %p160
      %p162 = scmp.ne.s32.totalorder %s151, %s152
      %p163 = scmp.eq.s32.totalorder %s19, 0
      %p164 = por %p162, %p163
      %p165 = scmp.ne.s32.totalorder %s151, %s152
      %p166 = scmp.eq.s32.totalorder %s20, 3
      %p167 = por %p165, %p166
      %p169 = scmp.ne.s32.totalorder %s152, %s168
      %p170 = scmp.eq.s32.totalorder %s20, 0
      %p171 = por %p169, %p170
      %p172 = scmp.le.s32.totalorder 1, %s14
      %p173 = scmp.lt.s32.totalorder %s14, 5
      %p174 = pnand %p172, %p173
      %p175 = pneg %p174
      // Predicated region
      $region9: #{tpu_custom_call.1} parent=5 // pred_check
        _
      $region10: #{tpu_custom_call.1} parent=5 // pred_check_branch
        %177 = sbr.rel (%p174) target = $region12
      $region11: #{tpu_custom_call.1} parent=5 // pred_region
        %s178 = ssub.s32 %s14, 1
        // Predicated region
        $region13: #{tpu_custom_call.1} parent=11 // pred_check
          %p179 = pneg %p75
        $region14: #{tpu_custom_call.1} parent=11 // pred_check_branch
          %181 = sbr.rel (%p179) target = $region16
        $region15: #{tpu_custom_call.1} parent=11 // pred_region
          _
        $region16: #{tpu_custom_call.1} parent=11 // pred_fallthru
          _
        // Predicated region
        $region17: #{tpu_custom_call.1} parent=11 // pred_check
          %p182 = pneg %p96
        $region18: #{tpu_custom_call.1} parent=11 // pred_check_branch
          %184 = sbr.rel (%p182) target = $region20
        $region19: #{tpu_custom_call.1} parent=11 // pred_region
          _
        $region20: #{tpu_custom_call.1} parent=11 // pred_fallthru
          _
        // Predicated region
        $region21: #{tpu_custom_call.1} parent=11 // pred_check
          %p185 = pneg %p117
        $region22: #{tpu_custom_call.1} parent=11 // pred_check_branch
          %187 = sbr.rel (%p185) target = $region24
        $region23: #{tpu_custom_call.1} parent=11 // pred_region
          _
        $region24: #{tpu_custom_call.1} parent=11 // pred_fallthru
          _
        // Predicated region
        $region25: #{tpu_custom_call.1} parent=11 // pred_check
          %p188 = pneg %p138
        $region26: #{tpu_custom_call.1} parent=11 // pred_check_branch
          %190 = sbr.rel (%p188) target = $region28
        $region27: #{tpu_custom_call.1} parent=11 // pred_region
          _
        $region28: #{tpu_custom_call.1} parent=11 // pred_fallthru
          _
      $region12: #{tpu_custom_call.1} parent=5 // pred_fallthru
        _
      %p191 = scmp.lt.s32.totalorder %s14, 4
      // Predicated region
      $region29: #{tpu_custom_call.1} parent=5 // pred_check
        %p192 = pneg %p191
      $region30: #{tpu_custom_call.1} parent=5 // pred_check_branch
        %194 = sbr.rel (%p192) target = $region32
      $region31: #{tpu_custom_call.1} parent=5 // pred_region
        // Predicated region
        $region33: #{tpu_custom_call.1} parent=31 // pred_check
          %p195 = pneg %p48
        $region34: #{tpu_custom_call.1} parent=31 // pred_check_branch
          %197 = sbr.rel (%p195) target = $region36
        $region35: #{tpu_custom_call.1} parent=31 // pred_region
          %s198 = smul.u32 4, %s22
          %p199 = scmp.lt.s32.totalorder %s21, 1
          %s200 = scalar_select %p199, %s21, 1
          %p201 = scmp.lt.s32.totalorder %s198, 7
          %s202 = scalar_select %p201, %s198, 7
          %s203 = smul.addr %s200, 8
          %s204 = sadd.s32 %s202, %s203
          %s205 = scalar_lea.vmem %s0, %s204
          %s206 = smul.u32 4, %s22
        $region36: #{tpu_custom_call.1} parent=31 // pred_fallthru
          _
      $region32: #{tpu_custom_call.1} parent=5 // pred_fallthru
        _
      %p207 = scmp.le.s32.totalorder 1, %s14
      %p208 = scmp.lt.s32.totalorder %s14, 5
      %p209 = pnand %p207, %p208
      %p210 = pneg %p209
      // Predicated region
      $region37: #{tpu_custom_call.1} parent=5 // pred_check
        _
      $region38: #{tpu_custom_call.1} parent=5 // pred_check_branch
        %212 = sbr.rel (%p209) target = $region40
      $region39: #{tpu_custom_call.1} parent=5 // pred_region
        %s213 = ssub.s32 %s14, 1
        %s214 = smul.u32 4, %s24
        %p215 = scmp.lt.s32.totalorder %s23, 1
        %s216 = scalar_select %p215, %s23, 1
        %p217 = scmp.lt.s32.totalorder %s214, 7
        %s218 = scalar_select %p217, %s214, 7
        %s219 = smul.addr %s216, 8
        %s220 = sadd.s32 %s218, %s219
        %s221 = scalar_lea.vmem %s0, %s220
        %p222 = pneg %p54
        %p223 = pneg %p51
        %p224 = pneg %p75
        %p225 = pneg %p72
        %p226 = pneg %p96
        %p227 = pneg %p93
        %p228 = pneg %p117
        %p229 = pneg %p114
        %p230 = pneg %p138
        %p231 = pneg %p135
        %p232 = pneg %p164
        %p233 = pneg %p161
        %s234 = sand.u32 %s151, 1
        %s235 = scalar_lea.sflag [#allocation4], %s234
        %s236 = sand.u32 %s151, 1
        %s237 = scalar_lea.vmem [#allocation3], %s236
        %s238 = smul.u32 4, %s24
        %p239 = scmp.lt.s32.totalorder %s23, 1
        %s240 = scalar_select %p239, %s23, 1
        %p241 = scmp.lt.s32.totalorder %s238, 7
        %s242 = scalar_select %p241, %s238, 7
        %s243 = smul.addr %s240, 8
        %s244 = sadd.s32 %s242, %s243
        %s245 = scalar_lea.vmem %s0, %s244
        %s246 = smul.u32 4, %s24
        %p247 = scmp.eq.s32.totalorder %s24, 0
        // Predicated region
        $region41: #{tpu_custom_call.1} parent=39 // pred_check
          %p248 = pneg %p247
        $region42: #{tpu_custom_call.1} parent=39 // pred_check_branch
          %250 = sbr.rel (%p248) target = $region44
        $region43: #{tpu_custom_call.1} parent=39 // pred_region
          %vm251 = vcmask 7168
          %252 = vst.msk [vmem:[#allocation2] sm:$0xff] %vm251, 0.0
          %253 = vst.msk [vmem:[#allocation2 + $0x8] sm:$0xff] %vm251, 0.0
          %254 = vst.msk [vmem:[#allocation2 + $0x10] sm:$0xff] %vm251, 0.0
          %255 = vst.msk [vmem:[#allocation2 + $0x18] sm:$0xff] %vm251, 0.0
        $region44: #{tpu_custom_call.1} parent=39 // pred_fallthru
          _
        %v256 = vld [vmem:[%s245] sm:$0xf]
        %v257 = vunpack.c.0.s8 %v256
        %v258 = vunpack.c.1.s8 %v256
        %v259 = vand.u32 %v257, 255
        %v260 = vand.u32 %v258, 255
        %v261 = vcvt.s32.f32 %v259
        %v262 = vcvt.s32.f32 %v260
        %v263 = vld [vmem:[%s1] sm:$0xff]
        %v264 = vld [vmem:[%s1 + $0x8] sm:$0xff]
        %v265 = vld [vmem:[%s1 + $0x10] sm:$0xff]
        %v266 = vld [vmem:[%s1 + $0x18] sm:$0xff]
        %v267 = vld [vmem:[%s2] sm:$0xff]
        %v268 = vld [vmem:[%s2 + $0x8] sm:$0xff]
        %v269 = vld [vmem:[%s2 + $0x10] sm:$0xff]
        %v270 = vld [vmem:[%s2 + $0x18] sm:$0xff]
        %272 = vset.pattern.permute.xlu0 0
        %273 = vperm.xlu0 %272, %v267
        %v274 = vpop.permute.xlu0 %273
        %277 = vset.pattern.permute.xlu0 0
        %278 = vperm.xlu0 %277, %v268
        %v279 = vpop.permute.xlu0 %278
        %282 = vset.pattern.permute.xlu0 0
        %283 = vperm.xlu0 %282, %v269
        %v284 = vpop.permute.xlu0 %283
        %287 = vset.pattern.permute.xlu0 0
        %288 = vperm.xlu0 %287, %v270
        %v289 = vpop.permute.xlu0 %288
        %v293 = vcombine.high %v261, %v261
        %v294 = vcombine.high %v262, %v262
        %vm295 = vcmask 23552
        %v297 = vsel %vm295, %v263, 0
        %v300 = vsel %vm295, %v264, 0
        %v303 = vsel %vm295, %v265, 0
        %v306 = vsel %vm295, %v266, 0
        %vm308 = vcmask 1042432
        %v309 = vsel %vm308, %v261, 0
        %v311 = vsel %vm308, %v293, 0
        %v313 = vsel %vm308, %v262, 0
        %v315 = vsel %vm308, %v294, 0
        %317 = vmatprep.subr.mxu0 %v311
        %318 = vmatpush1.msra.mxu0 %v309
        %319 = vmatprep.subr.mxu0 0.0
        %320 = vmatpush1.msra.mxu0 0.0
        %321 = vmatprep.subr.mxu0 0.0
        %322 = vmatpush1.msra.mxu0 0.0
        %323 = vmatprep.subr.mxu0 0.0
        %324 = vmatpush1.msra.mxu0 0.0
        %325 = vmatprep.subr.mxu0 0.0
        %326 = vmatpush1.msra.mxu0 0.0
        %327 = vmatprep.subr.mxu0 0.0
        %328 = vmatpush1.msra.mxu0 0.0
        %329 = vmatprep.subr.mxu0 0.0
        %330 = vmatpush1.msra.mxu0 0.0
        %331 = vmatprep.subr.mxu0 0.0
        %332 = vmatpush1.msra.mxu0 0.0
        %333 = vmatprep.subr.mxu0 0.0
        %334 = vmatpush1.msra.mxu0 0.0
        %335 = vmatprep.subr.mxu0 0.0
        %336 = vmatpush1.msra.mxu0 0.0
        %337 = vmatprep.subr.mxu0 0.0
        %338 = vmatpush1.msra.mxu0 0.0
        %339 = vmatprep.subr.mxu0 0.0
        %340 = vmatpush1.msra.mxu0 0.0
        %341 = vmatprep.subr.mxu0 0.0
        %342 = vmatpush1.msra.mxu0 0.0
        %343 = vmatprep.subr.mxu0 0.0
        %344 = vmatpush1.msra.mxu0 0.0
        %345 = vmatprep.subr.mxu0 0.0
        %346 = vmatpush1.msra.mxu0 0.0
        %347 = vmatprep.subr.mxu0 0.0
        %348 = vmatpush1.msra.mxu0 0.0
        %349 = vmatprep.subr.mxu0 0.0
        %350 = vmatpush1.msra.mxu0 0.0
        %351 = vmatprep.subr.mxu0 0.0
        %352 = vmatpush1.msra.mxu0 0.0
        %353 = vmatprep.subr.mxu0 0.0
        %354 = vmatpush1.msra.mxu0 0.0
        %355 = vmatprep.subr.mxu0 0.0
        %356 = vmatpush1.msra.mxu0 0.0
        %357 = vmatprep.subr.mxu0 0.0
        %358 = vmatpush1.msra.mxu0 0.0
        %359 = vmatprep.subr.mxu0 0.0
        %360 = vmatpush1.msra.mxu0 0.0
        %361 = vmatprep.subr.mxu0 0.0
        %362 = vmatpush1.msra.mxu0 0.0
        %363 = vmatprep.subr.mxu0 0.0
        %364 = vmatpush1.msra.mxu0 0.0
        %365 = vmatprep.subr.mxu0 0.0
        %366 = vmatpush1.msra.mxu0 0.0
        %367 = vmatprep.subr.mxu0 0.0
        %368 = vmatpush1.msra.mxu0 0.0
        %369 = vmatprep.subr.mxu0 0.0
        %370 = vmatpush1.msra.mxu0 0.0
        %371 = vmatprep.subr.mxu0 0.0
        %372 = vmatpush1.msra.mxu0 0.0
        %373 = vmatprep.subr.mxu0 0.0
        %374 = vmatpush1.msra.mxu0 0.0
        %375 = vmatprep.subr.mxu0 0.0
        %376 = vmatpush1.msra.mxu0 0.0
        %377 = vmatprep.subr.mxu0 0.0
        %378 = vmatpush1.msra.mxu0 0.0
        %379 = vmatprep.subr.mxu0 0.0
        %380 = vmatpush1.msra.mxu0 0.0
        %381 = vmatprep.mubr.f32.mxu0 0.0
        %382 = vmatmul.mubr.f32.gmra.mrb[0].mxu0 %v297
        %v383 = vpop.f32.mrb[0].mxu0
        %v384 = vadd.f32 %v274, %v383
        %v385 = vpop.f32.mrb[0].mxu0
        %v386 = vadd.f32 %v274, %v385
        %387 = vmatprep.mubr.f32.mxu0 0.0
        %388 = vmatmul.mubr.f32.gmra.mrb[0].mxu0 %v300
        %v389 = vpop.f32.mrb[0].mxu0
        %v390 = vadd.f32 %v279, %v389
        %v391 = vpop.f32.mrb[0].mxu0
        %v392 = vadd.f32 %v279, %v391
        %393 = vmatprep.mubr.f32.mxu0 0.0
        %394 = vmatmul.mubr.f32.gmra.mrb[0].mxu0 %v303
        %v395 = vpop.f32.mrb[0].mxu0
        %v396 = vadd.f32 %v284, %v395
        %v397 = vpop.f32.mrb[0].mxu0
        %v398 = vadd.f32 %v284, %v397
        %399 = vmatprep.mubr.f32.mxu0 0.0
        %400 = vmatmul.mubr.f32.gmra.mrb[0].mxu0 %v306
        %v401 = vpop.f32.mrb[0].mxu0
        %v402 = vadd.f32 %v289, %v401
        %v403 = vpop.f32.mrb[0].mxu0
        %v404 = vadd.f32 %v289, %v403
        %405 = vdwg.mxu0
        %406 = vmatprep.subr.mxu0 %v315
        %407 = vmatpush1.msra.mxu0 %v313
        %408 = vmatprep.subr.mxu0 0.0
        %409 = vmatpush1.msra.mxu0 0.0
        %410 = vmatprep.subr.mxu0 0.0
        %411 = vmatpush1.msra.mxu0 0.0
        %412 = vmatprep.subr.mxu0 0.0
        %413 = vmatpush1.msra.mxu0 0.0
        %414 = vmatprep.subr.mxu0 0.0
        %415 = vmatpush1.msra.mxu0 0.0
        %416 = vmatprep.subr.mxu0 0.0
        %417 = vmatpush1.msra.mxu0 0.0
        %418 = vmatprep.subr.mxu0 0.0
        %419 = vmatpush1.msra.mxu0 0.0
        %420 = vmatprep.subr.mxu0 0.0
        %421 = vmatpush1.msra.mxu0 0.0
        %422 = vmatprep.subr.mxu0 0.0
        %423 = vmatpush1.msra.mxu0 0.0
        %424 = vmatprep.subr.mxu0 0.0
        %425 = vmatpush1.msra.mxu0 0.0
        %426 = vmatprep.subr.mxu0 0.0
        %427 = vmatpush1.msra.mxu0 0.0
        %428 = vmatprep.subr.mxu0 0.0
        %429 = vmatpush1.msra.mxu0 0.0
        %430 = vmatprep.subr.mxu0 0.0
        %431 = vmatpush1.msra.mxu0 0.0
        %432 = vmatprep.subr.mxu0 0.0
        %433 = vmatpush1.msra.mxu0 0.0
        %434 = vmatprep.subr.mxu0 0.0
        %435 = vmatpush1.msra.mxu0 0.0
        %436 = vmatprep.subr.mxu0 0.0
        %437 = vmatpush1.msra.mxu0 0.0
        %438 = vmatprep.subr.mxu0 0.0
        %439 = vmatpush1.msra.mxu0 0.0
        %440 = vmatprep.subr.mxu0 0.0
        %441 = vmatpush1.msra.mxu0 0.0
        %442 = vmatprep.subr.mxu0 0.0
        %443 = vmatpush1.msra.mxu0 0.0
        %444 = vmatprep.subr.mxu0 0.0
        %445 = vmatpush1.msra.mxu0 0.0
        %446 = vmatprep.subr.mxu0 0.0
        %447 = vmatpush1.msra.mxu0 0.0
        %448 = vmatprep.subr.mxu0 0.0
        %449 = vmatpush1.msra.mxu0 0.0
        %450 = vmatprep.subr.mxu0 0.0
        %451 = vmatpush1.msra.mxu0 0.0
        %452 = vmatprep.subr.mxu0 0.0
        %453 = vmatpush1.msra.mxu0 0.0
        %454 = vmatprep.subr.mxu0 0.0
        %455 = vmatpush1.msra.mxu0 0.0
        %456 = vmatprep.subr.mxu0 0.0
        %457 = vmatpush1.msra.mxu0 0.0
        %458 = vmatprep.subr.mxu0 0.0
        %459 = vmatpush1.msra.mxu0 0.0
        %460 = vmatprep.subr.mxu0 0.0
        %461 = vmatpush1.msra.mxu0 0.0
        %462 = vmatprep.subr.mxu0 0.0
        %463 = vmatpush1.msra.mxu0 0.0
        %464 = vmatprep.subr.mxu0 0.0
        %465 = vmatpush1.msra.mxu0 0.0
        %466 = vmatprep.subr.mxu0 0.0
        %467 = vmatpush1.msra.mxu0 0.0
        %468 = vmatprep.subr.mxu0 0.0
        %469 = vmatpush1.msra.mxu0 0.0
        %470 = vmatprep.mubr.f32.mxu0 0.0
        %471 = vmatmul.mubr.f32.gmra.mrb[0].mxu0 %v297
        %v472 = vpop.f32.mrb[0].mxu0
        %v473 = vadd.f32 %v274, %v472
        %v474 = vpop.f32.mrb[0].mxu0
        %v475 = vadd.f32 %v274, %v474
        %476 = vmatprep.mubr.f32.mxu0 0.0
        %477 = vmatmul.mubr.f32.gmra.mrb[0].mxu0 %v300
        %v478 = vpop.f32.mrb[0].mxu0
        %v479 = vadd.f32 %v279, %v478
        %v480 = vpop.f32.mrb[0].mxu0
        %v481 = vadd.f32 %v279, %v480
        %482 = vmatprep.mubr.f32.mxu0 0.0
        %483 = vmatmul.mubr.f32.gmra.mrb[0].mxu0 %v303
        %v484 = vpop.f32.mrb[0].mxu0
        %v485 = vadd.f32 %v284, %v484
        %v486 = vpop.f32.mrb[0].mxu0
        %v487 = vadd.f32 %v284, %v486
        %488 = vmatprep.mubr.f32.mxu0 0.0
        %489 = vmatmul.mubr.f32.gmra.mrb[0].mxu0 %v306
        %v490 = vpop.f32.mrb[0].mxu0
        %v491 = vadd.f32 %v289, %v490
        %v492 = vpop.f32.mrb[0].mxu0
        %v493 = vadd.f32 %v289, %v492
        %494 = vdwg.mxu0
        %v495 = vmax.f32 %v384, 0.0
        %v496 = vmax.f32 %v386, 0.0
        %v497 = vmax.f32 %v473, 0.0
        %v498 = vmax.f32 %v475, 0.0
        %v499 = vmax.f32 %v390, 0.0
        %v500 = vmax.f32 %v392, 0.0
        %v501 = vmax.f32 %v479, 0.0
        %v502 = vmax.f32 %v481, 0.0
        %v503 = vmax.f32 %v396, 0.0
        %v504 = vmax.f32 %v398, 0.0
        %v505 = vmax.f32 %v485, 0.0
        %v506 = vmax.f32 %v487, 0.0
        %v507 = vmax.f32 %v402, 0.0
        %v508 = vmax.f32 %v404, 0.0
        %v509 = vmax.f32 %v491, 0.0
        %v510 = vmax.f32 %v493, 0.0
        %v511 = vld [vmem:[#allocation2] sm:$0xff]
        %v512 = vld [vmem:[#allocation2 + $0x8] sm:$0xff]
        %v513 = vld [vmem:[#allocation2 + $0x10] sm:$0xff]
        %v514 = vld [vmem:[#allocation2 + $0x18] sm:$0xff]
        %v515 = vadd.f32 %v495, %v496
        %v516 = vadd.f32 %v515, %v497
        %v517 = vadd.f32 %v516, %v498
        %518 = vadd.xlane.f32.xlu0 %v517
        %v519 = vpop.xlane.xlu0 %518
        %v520 = vadd.f32 %v499, %v500
        %v521 = vadd.f32 %v520, %v501
        %v522 = vadd.f32 %v521, %v502
        %523 = vadd.xlane.f32.xlu0 %v522
        %v524 = vpop.xlane.xlu0 %523
        %v525 = vadd.f32 %v503, %v504
        %v526 = vadd.f32 %v525, %v505
        %v527 = vadd.f32 %v526, %v506
        %528 = vadd.xlane.f32.xlu0 %v527
        %v529 = vpop.xlane.xlu0 %528
        %v530 = vadd.f32 %v507, %v508
        %v531 = vadd.f32 %v530, %v509
        %v532 = vadd.f32 %v531, %v510
        %533 = vadd.xlane.f32.xlu0 %v532
        %v534 = vpop.xlane.xlu0 %533
        %v535 = vadd.f32 %v511, %v519
        %v536 = vadd.f32 %v512, %v524
        %v537 = vadd.f32 %v513, %v529
        %v538 = vadd.f32 %v514, %v534
        %vm539 = vcmask 7168
        %540 = vst.msk [vmem:[#allocation2] sm:$0xff] %vm539, %v535
        %541 = vst.msk [vmem:[#allocation2 + $0x8] sm:$0xff] %vm539, %v536
        %542 = vst.msk [vmem:[#allocation2 + $0x10] sm:$0xff] %vm539, %v537
        %543 = vst.msk [vmem:[#allocation2 + $0x18] sm:$0xff] %vm539, %v538
        %p544 = scmp.eq.s32.totalorder %s24, 1
        // Predicated region
        $region45: #{tpu_custom_call.1} parent=39 // pred_check
          %p545 = pneg %p544
        $region46: #{tpu_custom_call.1} parent=39 // pred_check_branch
          %547 = sbr.rel (%p545) target = $region48
        $region47: #{tpu_custom_call.1} parent=39 // pred_region
          %v548 = vld [vmem:[#allocation2] sm:$0xff]
          %v549 = vld [vmem:[#allocation2 + $0x8] sm:$0xff]
          %v550 = vld [vmem:[#allocation2 + $0x10] sm:$0xff]
          %v551 = vld [vmem:[#allocation2 + $0x18] sm:$0xff]
          %v552 = vmul.f32 %v548, 0.0009765625
          %v553 = vmul.f32 %v549, 0.0009765625
          %v554 = vmul.f32 %v550, 0.0009765625
          %v555 = vmul.f32 %v551, 0.0009765625
          %v556 = vld [vmem:[%s3] sm:$0xff]
          %v557 = vld [vmem:[%s3 + $0x8] sm:$0xff]
          %v558 = vld [vmem:[%s3 + $0x10] sm:$0xff]
          %v559 = vld [vmem:[%s3 + $0x18] sm:$0xff]
          %561 = vset.pattern.permute.xlu0 0
          %562 = vperm.xlu0 %561, %v552
          %v563 = vpop.permute.xlu0 %562
          %566 = vset.pattern.permute.xlu0 0
          %567 = vperm.xlu0 %566, %v553
          %v568 = vpop.permute.xlu0 %567
          %571 = vset.pattern.permute.xlu0 0
          %572 = vperm.xlu0 %571, %v554
          %v573 = vpop.permute.xlu0 %572
          %576 = vset.pattern.permute.xlu0 0
          %577 = vperm.xlu0 %576, %v555
          %v578 = vpop.permute.xlu0 %577
          %v580 = vmul.f32 %v563, %v556
          %v581 = vmul.f32 %v568, %v557
          %v582 = vmul.f32 %v573, %v558
          %v583 = vmul.f32 %v578, %v559
          %vm584 = vcmask 130048
          %v585 = vsel %vm584, %v580, 0.0
          %v586 = vsel %vm584, %v581, 0.0
          %v587 = vadd.f32 %v585, %v586
          %v588 = vsel %vm584, %v582, 0.0
          %v589 = vadd.f32 %v587, %v588
          %v590 = vsel %vm584, %v583, 0.0
          %v591 = vadd.f32 %v589, %v590
          %v592 = vrot.slane %v591, 4
          %v593 = vadd.f32 %v591, %v592
          %v594 = vrot.slane %v593, 2
          %v595 = vadd.f32 %v593, %v594
          %v596 = vrot.slane %v595, 1
          %v597 = vadd.f32 %v595, %v596
          %v598 = vld [vmem:[%s4] sm:$0x1]
          %v599 = vadd.f32 %v597, %v598
          %v600 = vmul.f32 %v599, %v599
          %vm601 = vcmask 122880
          %v602 = vsel %vm601, %v600, 0.0
          %603 = vadd.xlane.f32.xlu0 %v602
          %v604 = vpop.xlane.xlu0 %603
          %v605 = vmax.f32 %v604, 1e-24
          %v606 = vrsqrt.pop %v605
          %v607 = vmul.f32 %v599, %v606
          %608 = vst.msk [vmem:[%s237] sm:$0x1] %vm601, %v607
        $region48: #{tpu_custom_call.1} parent=39 // pred_fallthru
          _
        %s609 = sand.u32 %s151, 1
        %s610 = scalar_lea.sflag [#allocation4], %s609
        %s611 = sand.u32 %s151, 1
        %s612 = scalar_lea.vmem [#allocation3], %s611
        // Predicated region
        $region49: #{tpu_custom_call.1} parent=39 // pred_check
          %p613 = pneg %p161
        $region50: #{tpu_custom_call.1} parent=39 // pred_check_branch
          %615 = sbr.rel (%p613) target = $region52
        $region51: #{tpu_custom_call.1} parent=39 // pred_region
          %s617 = ssub.s32 16, 16
          %618 = vsyncadd %s610, %s617
          %s619 = smul.addr %s23, 16
          %s620 = scalar_lea.hbm %s5, %s619
          %s622 = sshll.u32 %s612, 4
          %s623 = int_to_ptr.vmem [resolvable:$true] %s622
          %625 = dma.vmem_to_hbm [thread:$0]  %s623, 16, %s620, %s610
        $region52: #{tpu_custom_call.1} parent=39 // pred_fallthru
          _
      $region40: #{tpu_custom_call.1} parent=5 // pred_fallthru
        _
      %p626 = scmp.le.s32.totalorder 2, %s14
      // Predicated region
      $region53: #{tpu_custom_call.1} parent=5 // pred_check
        %p627 = pneg %p626
      $region54: #{tpu_custom_call.1} parent=5 // pred_check_branch
        %629 = sbr.rel (%p627) target = $region56
      $region55: #{tpu_custom_call.1} parent=5 // pred_region
        %s630 = ssub.s32 %s14, 2
        // Predicated region
        $region57: #{tpu_custom_call.1} parent=55 // pred_check
          %p631 = pneg %p167
        $region58: #{tpu_custom_call.1} parent=55 // pred_check_branch
          %633 = sbr.rel (%p631) target = $region60
        $region59: #{tpu_custom_call.1} parent=55 // pred_region
          %s634 = sand.u32 %s152, 1
          %s635 = scalar_lea.sflag [#allocation4], %s634
          %s636 = sand.u32 %s152, 1
          %s637 = scalar_lea.vmem [#allocation3], %s636
          %638 = dma.done %s635, 16
        $region60: #{tpu_custom_call.1} parent=55 // pred_fallthru
          _
      $region56: #{tpu_custom_call.1} parent=5 // pred_fallthru
        _
    $region6: #{tpu_custom_call.1} parent=1 // loop_footer
      %s18 = sadd.s32 1, %s14
    $region7: #{tpu_custom_call.1} parent=1 // loop_footer_branch
      %13 = sbr.rel target = $region3
    $region8: #{tpu_custom_call.1} parent=1 // loop_exit
      _
    %639 = vsyncpa [#allocation4], 1
    %s640 = scalar_lea.sflag [#allocation4], 1
    %641 = vsyncpa %s640, 1

</llo_original>
